<compile_context>
chip_gen: v7x
topology: tpu7x:2x2x1
jax: 0.10.0
libtpu: 0.0.40
codegen_flags: <defaults>
</compile_context>

<pallas_src>
import functools

import jax
import jax.numpy as jnp
from jax.experimental import pallas as pl
from jax.experimental.pallas import tpu as pltpu

LANE = 128     # vreg lane width
SUBLANE = 8    # vreg sublane granule (f32)


def gru_seq_kernel(ids_ref, slab_ref, out_ref, *, T, B_pad, H, vocab_pad):
    """Fused embedding-projection gather + whole-sequence single-layer GRU.

    ids_ref  : (T*B_pad, 1) int32  time-major token ids (row t*B_pad + b), VMEM
    slab_ref : (ROWS, 128)  f32    parameter slab, VMEM:
                 rows [0:vocab)               proj[v] = emb[v]@W_ih^T + (b_ih + [b_hr|b_hz|0])
                 rows [vocab_pad:vocab_pad+H) W_hh^T packed as [Whr^T|Whz^T|Whn^T|0]
                 row  [vocab_pad+H]           b_hn in lanes [0:H)
    out_ref  : (B_pad, T*H) f32    batch-first lane-dense output slab
    """
    slab = slab_ref[...]                       # (ROWS, 128)
    ids = ids_ref[...]                         # (T*B_pad, 1)
    rows = slab.shape[0]

    # Gather the projected-input rows for every (t, b) with ONE MXU matmul, fully off
    # the serial h-chain.  one-hot columns >= vocab are always zero (ids < vocab), so
    # the W_hh / b_hn rows of the slab contribute nothing.
    onehot = (ids == jax.lax.broadcasted_iota(jnp.int32, (T * B_pad, rows), 1)
              ).astype(jnp.float32)                                    # (T*B_pad, ROWS)
    gi_all = jnp.dot(onehot, slab, preferred_element_type=jnp.float32)  # (T*B_pad, 128)

    whh = slab[vocab_pad:vocab_pad + H, :]               # (H, 128) [Whr^T|Whz^T|Whn^T|0]
    bhn = slab[vocab_pad + H:vocab_pad + H + 1, :H]      # (1, H)

    h = jnp.zeros((B_pad, H), jnp.float32)
    outs = []
    # T is static -> this Python loop is the fully-unrolled recurrence with constant
    # offsets (equivalent to lax.fori_loop(0, T, body, unroll=True)).
    for t in range(T):
        gi = gi_all[t * B_pad:(t + 1) * B_pad, :]         # (B_pad, 128) aligned slice
        gh = jnp.dot(h, whh, preferred_element_type=jnp.float32)  # 1 MXU pass / step
        rz = jax.nn.sigmoid(gi[:, :2 * H] + gh[:, :2 * H])        # fused r/z pre-act
        r = rz[:, :H]
        z = rz[:, H:2 * H]
        n = jnp.tanh(gi[:, 2 * H:3 * H] + r * (gh[:, 2 * H:3 * H] + bhn))
        h = n + z * (h - n)                               # == (1-z)*n + z*h
        outs.append(h)

    # Single lane-dense store: T*H is a multiple of 128 lanes, B_pad = 8 sublanes.
    out_ref[...] = jnp.concatenate(outs, axis=1)


def pack_gru_params(embedding, w_ih, w_hh, b_ih, b_hh):
    """One-time param-pack-time prep: build the fused (ROWS, 128) parameter slab.

    PyTorch GRU layout: w_ih (3H, E), w_hh (3H, H), biases (3H,), gate order [r|z|n].
    """
    vocab, _ = embedding.shape
    H = w_hh.shape[1]
    assert 3 * H <= LANE, "compact gate packing assumes 3*hidden_size <= 128"
    vocab_pad = -(-vocab // SUBLANE) * SUBLANE
    rows = vocab_pad + H + SUBLANE

    emb = embedding.astype(jnp.float32)
    w_ih = w_ih.astype(jnp.float32)
    w_hh = w_hh.astype(jnp.float32)
    b_ih = b_ih.astype(jnp.float32)
    b_hh = b_hh.astype(jnp.float32)

    # Pre-sum r/z hidden-side biases into the projected table; b_hn stays separate
    # (it must live inside r * (h@Whn^T + b_hn)).
    bias = b_ih + jnp.concatenate([b_hh[:2 * H], jnp.zeros((H,), jnp.float32)])
    proj = emb @ w_ih.T + bias[None, :]                   # (vocab, 3H), gates [r|z|n]

    slab = jnp.zeros((rows, LANE), jnp.float32)
    slab = slab.at[:vocab, :3 * H].set(proj)
    slab = slab.at[vocab_pad:vocab_pad + H, :3 * H].set(w_hh.T)   # [Whr^T|Whz^T|Whn^T]
    slab = slab.at[vocab_pad + H, :H].set(b_hh[2 * H:3 * H])
    return slab, vocab_pad, H


def rnn_encoder_forward(src_tokens, slab, *, vocab_pad, hidden_size):
    """Mirrors RNNEncoder.forward for 2-D integer input (B, T):
    embedding lookup -> input_dropout (p=0.0 / eval => identity) -> GRU (batch_first).
    Returns (outputs (B, T, H), hidden (1, B, H))."""
    B, T = src_tokens.shape
    H = hidden_size
    B_pad = max(SUBLANE, -(-B // SUBLANE) * SUBLANE)

    # Time-major int32 ids padded to the 8-row sublane granule (pad rows use token 0;
    # the GRU never mixes batch rows, so they are sliced off below).
    ids = jnp.zeros((T, B_pad), jnp.int32).at[:, :B].set(src_tokens.T)
    ids = ids.reshape(T * B_pad, 1)

    # input_dropout with p=0.0 / eval mode == identity.
    # TODO(synk): multi-layer / bidirectional GRU stacking not implemented
    # (config: num_encoder_layers=1, bidirectional_encoder=False).
    vmem = pl.BlockSpec(memory_space=pltpu.MemorySpace.VMEM)
    out_flat = pl.pallas_call(
        functools.partial(gru_seq_kernel, T=T, B_pad=B_pad, H=H, vocab_pad=vocab_pad),
        out_shape=jax.ShapeDtypeStruct((B_pad, T * H), jnp.float32),
        in_specs=[vmem, vmem],
        out_specs=vmem,
    )(ids, slab)

    outputs = out_flat[:B].reshape(B, T, H)   # free reshape: identical row-major layout
    hidden = outputs[:, -1, :][None]          # 1-layer unidirectional: h_T == last output
    return outputs, hidden


def gru_reference(embeds_btE, w_ih, w_hh, b_ih, b_hh):
    """Pure-JAX reference GRU (PyTorch gate order r, z, n) for correctness check."""
    B, T, _ = embeds_btE.shape
    H = w_hh.shape[1]

    def step(h, x):
        gi = x @ w_ih.T + b_ih
        gh = h @ w_hh.T + b_hh
        i_r, i_z, i_n = gi[:, :H], gi[:, H:2 * H], gi[:, 2 * H:]
        h_r, h_z, h_n = gh[:, :H], gh[:, H:2 * H], gh[:, 2 * H:]
        r = jax.nn.sigmoid(i_r + h_r)
        z = jax.nn.sigmoid(i_z + h_z)
        n = jnp.tanh(i_n + r * h_n)
        h_new = (1.0 - z) * n + z * h
        return h_new, h_new

    h0 = jnp.zeros((B, H), jnp.float32)
    hN, outs = jax.lax.scan(step, h0, jnp.transpose(embeds_btE, (1, 0, 2)))
    return jnp.transpose(outs, (1, 0, 2)), hN[None]


if __name__ == "__main__":
    # Small, deterministic setup consistent with the module config.
    vocab_size = 50
    embedding_size = 32
    hidden_size = 32
    batch_size = 2
    seq_len = 8

    key = jax.random.PRNGKey(0)
    k_emb, k_wih, k_whh, k_bih, k_bhh, k_src = jax.random.split(key, 6)

    params = {
        "embedding": jax.random.normal(k_emb, (vocab_size, embedding_size), jnp.float32) * 0.1,
        "w_ih": jax.random.normal(k_wih, (3 * hidden_size, embedding_size), jnp.float32) * 0.1,
        "w_hh": jax.random.normal(k_whh, (3 * hidden_size, hidden_size), jnp.float32) * 0.1,
        "b_ih": jax.random.normal(k_bih, (3 * hidden_size,), jnp.float32) * 0.1,
        "b_hh": jax.random.normal(k_bhh, (3 * hidden_size,), jnp.float32) * 0.1,
    }

    src = jax.random.randint(k_src, (batch_size, seq_len), 0, vocab_size, dtype=jnp.int32)

    # One-time parameter pack (projected embedding table + packed recurrent weights).
    slab, vocab_pad, H = pack_gru_params(
        params["embedding"], params["w_ih"], params["w_hh"], params["b_ih"], params["b_hh"])
    slab = jax.block_until_ready(slab)

    forward = jax.jit(functools.partial(
        rnn_encoder_forward, vocab_pad=vocab_pad, hidden_size=H))
    outputs, hidden = forward(src, slab)
    outputs = jax.block_until_ready(outputs)
    hidden = jax.block_until_ready(hidden)

    # Cross-check against pure-JAX reference GRU (embedding gather + scan).
    embeds_ref = jnp.take(params["embedding"], src, axis=0)   # (B, T, E)
    ref_out, ref_hid = gru_reference(
        embeds_ref, params["w_ih"], params["w_hh"], params["b_ih"], params["b_hh"])
    assert outputs.shape == (batch_size, seq_len, hidden_size)
    assert hidden.shape == (1, batch_size, hidden_size)
    assert jnp.allclose(outputs, ref_out, atol=1e-5, rtol=1e-5)
    assert jnp.allclose(hidden, ref_hid, atol=1e-5, rtol=1e-5)

    print("KERNEL_OK")
</pallas_src>

<mosaic_0001>
module attributes {stable_mosaic.version = 11 : i64} {
  func.func @gru_seq_kernel(%arg0: memref<64x1xi32, #tpu.memory_space<vmem>>, %arg1: memref<96x128xf32, #tpu.memory_space<vmem>>, %arg2: memref<8x256xf32, #tpu.memory_space<vmem>>) attributes {dimension_semantics = [], scalar_prefetch = 0 : i64, scratch_operands = 0 : i64, tpu.core_type = #tpu.core_type<tc>} {
    %c0 = arith.constant 0 : index
    %c0_0 = arith.constant 0 : index
    %0 = vector.load %arg1[%c0, %c0_0] : memref<96x128xf32, #tpu.memory_space<vmem>>, vector<96x128xf32>
    %c0_1 = arith.constant 0 : index
    %c0_2 = arith.constant 0 : index
    %1 = vector.load %arg0[%c0_1, %c0_2] : memref<64x1xi32, #tpu.memory_space<vmem>>, vector<64x1xi32>
    %2 = tpu.iota {dimensions = array<i32: 1>} : vector<64x96xi32>
    %3 = vector.broadcast %1 : vector<64x1xi32> to vector<64x96xi32>
    %4 = arith.cmpi eq, %3, %2 : vector<64x96xi32>
    %5 = arith.extui %4 : vector<64x96xi1> to vector<64x96xi32>
    %6 = arith.sitofp %5 : vector<64x96xi32> to vector<64x96xf32>
    %cst = arith.constant dense<0.000000e+00> : vector<64x128xf32>
    %7 = tpu.matmul %6, %0, %cst {dimension_numbers = #tpu.dot_dimension_numbers<[1], [0], [0], [1], [0, 0, 1, 1], [], []>} : vector<64x96xf32>, vector<96x128xf32>, vector<64x128xf32> -> vector<64x128xf32>
    %8 = vector.extract_strided_slice %0 {offsets = [56, 0], sizes = [32, 128], strides = [1, 1]} : vector<96x128xf32> to vector<32x128xf32>
    %9 = vector.extract_strided_slice %0 {offsets = [88, 0], sizes = [1, 32], strides = [1, 1]} : vector<96x128xf32> to vector<1x32xf32>
    %cst_3 = arith.constant 0.000000e+00 : f32
    %10 = vector.broadcast %cst_3 : f32 to vector<8x32xf32>
    %11 = vector.extract_strided_slice %7 {offsets = [0, 0], sizes = [8, 128], strides = [1, 1]} : vector<64x128xf32> to vector<8x128xf32>
    %cst_4 = arith.constant dense<0.000000e+00> : vector<8x128xf32>
    %12 = tpu.matmul %10, %8, %cst_4 {dimension_numbers = #tpu.dot_dimension_numbers<[1], [0], [0], [1], [0, 0, 1, 1], [], []>} : vector<8x32xf32>, vector<32x128xf32>, vector<8x128xf32> -> vector<8x128xf32>
    %13 = vector.extract_strided_slice %11 {offsets = [0, 0], sizes = [8, 64], strides = [1, 1]} : vector<8x128xf32> to vector<8x64xf32>
    %14 = vector.extract_strided_slice %12 {offsets = [0, 0], sizes = [8, 64], strides = [1, 1]} : vector<8x128xf32> to vector<8x64xf32>
    %15 = arith.addf %13, %14 : vector<8x64xf32>
    %16 = arith.negf %15 : vector<8x64xf32>
    %17 = math.exp %16 : vector<8x64xf32>
    %cst_5 = arith.constant 1.000000e+00 : f32
    %18 = vector.broadcast %cst_5 : f32 to vector<8x64xf32>
    %19 = arith.addf %18, %17 : vector<8x64xf32>
    %20 = arith.divf %18, %19 : vector<8x64xf32>
    %21 = vector.extract_strided_slice %20 {offsets = [0, 0], sizes = [8, 32], strides = [1, 1]} : vector<8x64xf32> to vector<8x32xf32>
    %22 = vector.extract_strided_slice %20 {offsets = [0, 32], sizes = [8, 32], strides = [1, 1]} : vector<8x64xf32> to vector<8x32xf32>
    %23 = vector.extract_strided_slice %11 {offsets = [0, 64], sizes = [8, 32], strides = [1, 1]} : vector<8x128xf32> to vector<8x32xf32>
    %24 = vector.extract_strided_slice %12 {offsets = [0, 64], sizes = [8, 32], strides = [1, 1]} : vector<8x128xf32> to vector<8x32xf32>
    %25 = vector.broadcast %9 : vector<1x32xf32> to vector<8x32xf32>
    %26 = arith.addf %24, %25 : vector<8x32xf32>
    %27 = arith.mulf %21, %26 : vector<8x32xf32>
    %28 = arith.addf %23, %27 : vector<8x32xf32>
    %29 = math.tanh %28 : vector<8x32xf32>
    %30 = arith.subf %10, %29 : vector<8x32xf32>
    %31 = arith.mulf %22, %30 : vector<8x32xf32>
    %32 = arith.addf %29, %31 : vector<8x32xf32>
    %33 = vector.extract_strided_slice %7 {offsets = [8, 0], sizes = [8, 128], strides = [1, 1]} : vector<64x128xf32> to vector<8x128xf32>
    %cst_6 = arith.constant dense<0.000000e+00> : vector<8x128xf32>
    %34 = tpu.matmul %32, %8, %cst_6 {dimension_numbers = #tpu.dot_dimension_numbers<[1], [0], [0], [1], [0, 0, 1, 1], [], []>} : vector<8x32xf32>, vector<32x128xf32>, vector<8x128xf32> -> vector<8x128xf32>
    %35 = vector.extract_strided_slice %33 {offsets = [0, 0], sizes = [8, 64], strides = [1, 1]} : vector<8x128xf32> to vector<8x64xf32>
    %36 = vector.extract_strided_slice %34 {offsets = [0, 0], sizes = [8, 64], strides = [1, 1]} : vector<8x128xf32> to vector<8x64xf32>
    %37 = arith.addf %35, %36 : vector<8x64xf32>
    %38 = arith.negf %37 : vector<8x64xf32>
    %39 = math.exp %38 : vector<8x64xf32>
    %cst_7 = arith.constant 1.000000e+00 : f32
    %40 = vector.broadcast %cst_7 : f32 to vector<8x64xf32>
    %41 = arith.addf %40, %39 : vector<8x64xf32>
    %42 = arith.divf %40, %41 : vector<8x64xf32>
    %43 = vector.extract_strided_slice %42 {offsets = [0, 0], sizes = [8, 32], strides = [1, 1]} : vector<8x64xf32> to vector<8x32xf32>
    %44 = vector.extract_strided_slice %42 {offsets = [0, 32], sizes = [8, 32], strides = [1, 1]} : vector<8x64xf32> to vector<8x32xf32>
    %45 = vector.extract_strided_slice %33 {offsets = [0, 64], sizes = [8, 32], strides = [1, 1]} : vector<8x128xf32> to vector<8x32xf32>
    %46 = vector.extract_strided_slice %34 {offsets = [0, 64], sizes = [8, 32], strides = [1, 1]} : vector<8x128xf32> to vector<8x32xf32>
    %47 = vector.broadcast %9 : vector<1x32xf32> to vector<8x32xf32>
    %48 = arith.addf %46, %47 : vector<8x32xf32>
    %49 = arith.mulf %43, %48 : vector<8x32xf32>
    %50 = arith.addf %45, %49 : vector<8x32xf32>
    %51 = math.tanh %50 : vector<8x32xf32>
    %52 = arith.subf %32, %51 : vector<8x32xf32>
    %53 = arith.mulf %44, %52 : vector<8x32xf32>
    %54 = arith.addf %51, %53 : vector<8x32xf32>
    %55 = vector.extract_strided_slice %7 {offsets = [16, 0], sizes = [8, 128], strides = [1, 1]} : vector<64x128xf32> to vector<8x128xf32>
    %cst_8 = arith.constant dense<0.000000e+00> : vector<8x128xf32>
    %56 = tpu.matmul %54, %8, %cst_8 {dimension_numbers = #tpu.dot_dimension_numbers<[1], [0], [0], [1], [0, 0, 1, 1], [], []>} : vector<8x32xf32>, vector<32x128xf32>, vector<8x128xf32> -> vector<8x128xf32>
    %57 = vector.extract_strided_slice %55 {offsets = [0, 0], sizes = [8, 64], strides = [1, 1]} : vector<8x128xf32> to vector<8x64xf32>
    %58 = vector.extract_strided_slice %56 {offsets = [0, 0], sizes = [8, 64], strides = [1, 1]} : vector<8x128xf32> to vector<8x64xf32>
    %59 = arith.addf %57, %58 : vector<8x64xf32>
    %60 = arith.negf %59 : vector<8x64xf32>
    %61 = math.exp %60 : vector<8x64xf32>
    %cst_9 = arith.constant 1.000000e+00 : f32
    %62 = vector.broadcast %cst_9 : f32 to vector<8x64xf32>
    %63 = arith.addf %62, %61 : vector<8x64xf32>
    %64 = arith.divf %62, %63 : vector<8x64xf32>
    %65 = vector.extract_strided_slice %64 {offsets = [0, 0], sizes = [8, 32], strides = [1, 1]} : vector<8x64xf32> to vector<8x32xf32>
    %66 = vector.extract_strided_slice %64 {offsets = [0, 32], sizes = [8, 32], strides = [1, 1]} : vector<8x64xf32> to vector<8x32xf32>
    %67 = vector.extract_strided_slice %55 {offsets = [0, 64], sizes = [8, 32], strides = [1, 1]} : vector<8x128xf32> to vector<8x32xf32>
    %68 = vector.extract_strided_slice %56 {offsets = [0, 64], sizes = [8, 32], strides = [1, 1]} : vector<8x128xf32> to vector<8x32xf32>
    %69 = vector.broadcast %9 : vector<1x32xf32> to vector<8x32xf32>
    %70 = arith.addf %68, %69 : vector<8x32xf32>
    %71 = arith.mulf %65, %70 : vector<8x32xf32>
    %72 = arith.addf %67, %71 : vector<8x32xf32>
    %73 = math.tanh %72 : vector<8x32xf32>
    %74 = arith.subf %54, %73 : vector<8x32xf32>
    %75 = arith.mulf %66, %74 : vector<8x32xf32>
    %76 = arith.addf %73, %75 : vector<8x32xf32>
    %77 = vector.extract_strided_slice %7 {offsets = [24, 0], sizes = [8, 128], strides = [1, 1]} : vector<64x128xf32> to vector<8x128xf32>
    %cst_10 = arith.constant dense<0.000000e+00> : vector<8x128xf32>
    %78 = tpu.matmul %76, %8, %cst_10 {dimension_numbers = #tpu.dot_dimension_numbers<[1], [0], [0], [1], [0, 0, 1, 1], [], []>} : vector<8x32xf32>, vector<32x128xf32>, vector<8x128xf32> -> vector<8x128xf32>
    %79 = vector.extract_strided_slice %77 {offsets = [0, 0], sizes = [8, 64], strides = [1, 1]} : vector<8x128xf32> to vector<8x64xf32>
    %80 = vector.extract_strided_slice %78 {offsets = [0, 0], sizes = [8, 64], strides = [1, 1]} : vector<8x128xf32> to vector<8x64xf32>
    %81 = arith.addf %79, %80 : vector<8x64xf32>
    %82 = arith.negf %81 : vector<8x64xf32>
    %83 = math.exp %82 : vector<8x64xf32>
    %cst_11 = arith.constant 1.000000e+00 : f32
    %84 = vector.broadcast %cst_11 : f32 to vector<8x64xf32>
    %85 = arith.addf %84, %83 : vector<8x64xf32>
    %86 = arith.divf %84, %85 : vector<8x64xf32>
    %87 = vector.extract_strided_slice %86 {offsets = [0, 0], sizes = [8, 32], strides = [1, 1]} : vector<8x64xf32> to vector<8x32xf32>
    %88 = vector.extract_strided_slice %86 {offsets = [0, 32], sizes = [8, 32], strides = [1, 1]} : vector<8x64xf32> to vector<8x32xf32>
    %89 = vector.extract_strided_slice %77 {offsets = [0, 64], sizes = [8, 32], strides = [1, 1]} : vector<8x128xf32> to vector<8x32xf32>
    %90 = vector.extract_strided_slice %78 {offsets = [0, 64], sizes = [8, 32], strides = [1, 1]} : vector<8x128xf32> to vector<8x32xf32>
    %91 = vector.broadcast %9 : vector<1x32xf32> to vector<8x32xf32>
    %92 = arith.addf %90, %91 : vector<8x32xf32>
    %93 = arith.mulf %87, %92 : vector<8x32xf32>
    %94 = arith.addf %89, %93 : vector<8x32xf32>
    %95 = math.tanh %94 : vector<8x32xf32>
    %96 = arith.subf %76, %95 : vector<8x32xf32>
    %97 = arith.mulf %88, %96 : vector<8x32xf32>
    %98 = arith.addf %95, %97 : vector<8x32xf32>
    %99 = vector.extract_strided_slice %7 {offsets = [32, 0], sizes = [8, 128], strides = [1, 1]} : vector<64x128xf32> to vector<8x128xf32>
    %cst_12 = arith.constant dense<0.000000e+00> : vector<8x128xf32>
    %100 = tpu.matmul %98, %8, %cst_12 {dimension_numbers = #tpu.dot_dimension_numbers<[1], [0], [0], [1], [0, 0, 1, 1], [], []>} : vector<8x32xf32>, vector<32x128xf32>, vector<8x128xf32> -> vector<8x128xf32>
    %101 = vector.extract_strided_slice %99 {offsets = [0, 0], sizes = [8, 64], strides = [1, 1]} : vector<8x128xf32> to vector<8x64xf32>
    %102 = vector.extract_strided_slice %100 {offsets = [0, 0], sizes = [8, 64], strides = [1, 1]} : vector<8x128xf32> to vector<8x64xf32>
    %103 = arith.addf %101, %102 : vector<8x64xf32>
    %104 = arith.negf %103 : vector<8x64xf32>
    %105 = math.exp %104 : vector<8x64xf32>
    %cst_13 = arith.constant 1.000000e+00 : f32
    %106 = vector.broadcast %cst_13 : f32 to vector<8x64xf32>
    %107 = arith.addf %106, %105 : vector<8x64xf32>
    %108 = arith.divf %106, %107 : vector<8x64xf32>
    %109 = vector.extract_strided_slice %108 {offsets = [0, 0], sizes = [8, 32], strides = [1, 1]} : vector<8x64xf32> to vector<8x32xf32>
    %110 = vector.extract_strided_slice %108 {offsets = [0, 32], sizes = [8, 32], strides = [1, 1]} : vector<8x64xf32> to vector<8x32xf32>
    %111 = vector.extract_strided_slice %99 {offsets = [0, 64], sizes = [8, 32], strides = [1, 1]} : vector<8x128xf32> to vector<8x32xf32>
    %112 = vector.extract_strided_slice %100 {offsets = [0, 64], sizes = [8, 32], strides = [1, 1]} : vector<8x128xf32> to vector<8x32xf32>
    %113 = vector.broadcast %9 : vector<1x32xf32> to vector<8x32xf32>
    %114 = arith.addf %112, %113 : vector<8x32xf32>
    %115 = arith.mulf %109, %114 : vector<8x32xf32>
    %116 = arith.addf %111, %115 : vector<8x32xf32>
    %117 = math.tanh %116 : vector<8x32xf32>
    %118 = arith.subf %98, %117 : vector<8x32xf32>
    %119 = arith.mulf %110, %118 : vector<8x32xf32>
    %120 = arith.addf %117, %119 : vector<8x32xf32>
    %121 = vector.extract_strided_slice %7 {offsets = [40, 0], sizes = [8, 128], strides = [1, 1]} : vector<64x128xf32> to vector<8x128xf32>
    %cst_14 = arith.constant dense<0.000000e+00> : vector<8x128xf32>
    %122 = tpu.matmul %120, %8, %cst_14 {dimension_numbers = #tpu.dot_dimension_numbers<[1], [0], [0], [1], [0, 0, 1, 1], [], []>} : vector<8x32xf32>, vector<32x128xf32>, vector<8x128xf32> -> vector<8x128xf32>
    %123 = vector.extract_strided_slice %121 {offsets = [0, 0], sizes = [8, 64], strides = [1, 1]} : vector<8x128xf32> to vector<8x64xf32>
    %124 = vector.extract_strided_slice %122 {offsets = [0, 0], sizes = [8, 64], strides = [1, 1]} : vector<8x128xf32> to vector<8x64xf32>
    %125 = arith.addf %123, %124 : vector<8x64xf32>
    %126 = arith.negf %125 : vector<8x64xf32>
    %127 = math.exp %126 : vector<8x64xf32>
    %cst_15 = arith.constant 1.000000e+00 : f32
    %128 = vector.broadcast %cst_15 : f32 to vector<8x64xf32>
    %129 = arith.addf %128, %127 : vector<8x64xf32>
    %130 = arith.divf %128, %129 : vector<8x64xf32>
    %131 = vector.extract_strided_slice %130 {offsets = [0, 0], sizes = [8, 32], strides = [1, 1]} : vector<8x64xf32> to vector<8x32xf32>
    %132 = vector.extract_strided_slice %130 {offsets = [0, 32], sizes = [8, 32], strides = [1, 1]} : vector<8x64xf32> to vector<8x32xf32>
    %133 = vector.extract_strided_slice %121 {offsets = [0, 64], sizes = [8, 32], strides = [1, 1]} : vector<8x128xf32> to vector<8x32xf32>
    %134 = vector.extract_strided_slice %122 {offsets = [0, 64], sizes = [8, 32], strides = [1, 1]} : vector<8x128xf32> to vector<8x32xf32>
    %135 = vector.broadcast %9 : vector<1x32xf32> to vector<8x32xf32>
    %136 = arith.addf %134, %135 : vector<8x32xf32>
    %137 = arith.mulf %131, %136 : vector<8x32xf32>
    %138 = arith.addf %133, %137 : vector<8x32xf32>
    %139 = math.tanh %138 : vector<8x32xf32>
    %140 = arith.subf %120, %139 : vector<8x32xf32>
    %141 = arith.mulf %132, %140 : vector<8x32xf32>
    %142 = arith.addf %139, %141 : vector<8x32xf32>
    %143 = vector.extract_strided_slice %7 {offsets = [48, 0], sizes = [8, 128], strides = [1, 1]} : vector<64x128xf32> to vector<8x128xf32>
    %cst_16 = arith.constant dense<0.000000e+00> : vector<8x128xf32>
    %144 = tpu.matmul %142, %8, %cst_16 {dimension_numbers = #tpu.dot_dimension_numbers<[1], [0], [0], [1], [0, 0, 1, 1], [], []>} : vector<8x32xf32>, vector<32x128xf32>, vector<8x128xf32> -> vector<8x128xf32>
    %145 = vector.extract_strided_slice %143 {offsets = [0, 0], sizes = [8, 64], strides = [1, 1]} : vector<8x128xf32> to vector<8x64xf32>
    %146 = vector.extract_strided_slice %144 {offsets = [0, 0], sizes = [8, 64], strides = [1, 1]} : vector<8x128xf32> to vector<8x64xf32>
    %147 = arith.addf %145, %146 : vector<8x64xf32>
    %148 = arith.negf %147 : vector<8x64xf32>
    %149 = math.exp %148 : vector<8x64xf32>
    %cst_17 = arith.constant 1.000000e+00 : f32
    %150 = vector.broadcast %cst_17 : f32 to vector<8x64xf32>
    %151 = arith.addf %150, %149 : vector<8x64xf32>
    %152 = arith.divf %150, %151 : vector<8x64xf32>
    %153 = vector.extract_strided_slice %152 {offsets = [0, 0], sizes = [8, 32], strides = [1, 1]} : vector<8x64xf32> to vector<8x32xf32>
    %154 = vector.extract_strided_slice %152 {offsets = [0, 32], sizes = [8, 32], strides = [1, 1]} : vector<8x64xf32> to vector<8x32xf32>
    %155 = vector.extract_strided_slice %143 {offsets = [0, 64], sizes = [8, 32], strides = [1, 1]} : vector<8x128xf32> to vector<8x32xf32>
    %156 = vector.extract_strided_slice %144 {offsets = [0, 64], sizes = [8, 32], strides = [1, 1]} : vector<8x128xf32> to vector<8x32xf32>
    %157 = vector.broadcast %9 : vector<1x32xf32> to vector<8x32xf32>
    %158 = arith.addf %156, %157 : vector<8x32xf32>
    %159 = arith.mulf %153, %158 : vector<8x32xf32>
    %160 = arith.addf %155, %159 : vector<8x32xf32>
    %161 = math.tanh %160 : vector<8x32xf32>
    %162 = arith.subf %142, %161 : vector<8x32xf32>
    %163 = arith.mulf %154, %162 : vector<8x32xf32>
    %164 = arith.addf %161, %163 : vector<8x32xf32>
    %165 = vector.extract_strided_slice %7 {offsets = [56, 0], sizes = [8, 128], strides = [1, 1]} : vector<64x128xf32> to vector<8x128xf32>
    %cst_18 = arith.constant dense<0.000000e+00> : vector<8x128xf32>
    %166 = tpu.matmul %164, %8, %cst_18 {dimension_numbers = #tpu.dot_dimension_numbers<[1], [0], [0], [1], [0, 0, 1, 1], [], []>} : vector<8x32xf32>, vector<32x128xf32>, vector<8x128xf32> -> vector<8x128xf32>
    %167 = vector.extract_strided_slice %165 {offsets = [0, 0], sizes = [8, 64], strides = [1, 1]} : vector<8x128xf32> to vector<8x64xf32>
    %168 = vector.extract_strided_slice %166 {offsets = [0, 0], sizes = [8, 64], strides = [1, 1]} : vector<8x128xf32> to vector<8x64xf32>
    %169 = arith.addf %167, %168 : vector<8x64xf32>
    %170 = arith.negf %169 : vector<8x64xf32>
    %171 = math.exp %170 : vector<8x64xf32>
    %cst_19 = arith.constant 1.000000e+00 : f32
    %172 = vector.broadcast %cst_19 : f32 to vector<8x64xf32>
    %173 = arith.addf %172, %171 : vector<8x64xf32>
    %174 = arith.divf %172, %173 : vector<8x64xf32>
    %175 = vector.extract_strided_slice %174 {offsets = [0, 0], sizes = [8, 32], strides = [1, 1]} : vector<8x64xf32> to vector<8x32xf32>
    %176 = vector.extract_strided_slice %174 {offsets = [0, 32], sizes = [8, 32], strides = [1, 1]} : vector<8x64xf32> to vector<8x32xf32>
    %177 = vector.extract_strided_slice %165 {offsets = [0, 64], sizes = [8, 32], strides = [1, 1]} : vector<8x128xf32> to vector<8x32xf32>
    %178 = vector.extract_strided_slice %166 {offsets = [0, 64], sizes = [8, 32], strides = [1, 1]} : vector<8x128xf32> to vector<8x32xf32>
    %179 = vector.broadcast %9 : vector<1x32xf32> to vector<8x32xf32>
    %180 = arith.addf %178, %179 : vector<8x32xf32>
    %181 = arith.mulf %175, %180 : vector<8x32xf32>
    %182 = arith.addf %177, %181 : vector<8x32xf32>
    %183 = math.tanh %182 : vector<8x32xf32>
    %184 = arith.subf %164, %183 : vector<8x32xf32>
    %185 = arith.mulf %176, %184 : vector<8x32xf32>
    %186 = arith.addf %183, %185 : vector<8x32xf32>
    %187 = tpu.concatenate %32, %54, %76, %98, %120, %142, %164, %186 in 1 : vector<8x32xf32>, vector<8x32xf32>, vector<8x32xf32>, vector<8x32xf32>, vector<8x32xf32>, vector<8x32xf32>, vector<8x32xf32>, vector<8x32xf32> -> vector<8x256xf32>
    %c0_20 = arith.constant 0 : index
    %c0_21 = arith.constant 0 : index
    %188 = vector.load %arg2[%c0_20, %c0_21] : memref<8x256xf32, #tpu.memory_space<vmem>>, vector<8x256xf32>
    tpu.vector_store %arg2[%c0_20, %c0_21], %187 {strides = array<i32>} : memref<8x256xf32, #tpu.memory_space<vmem>>, vector<8x256xf32>,
    return
  }
}

</mosaic_0001>

<llo_original>
// kernel: rnn_encoder_forward.1
$region0: #{rnn_encoder_forward.1}
  #allocation0 [shape = 'u32[]', space=smem, size = 0x4, offset = 0x4, fixed_abs, tag = 'smem constant byte address 0x4 - core index']
  #allocation1 [shape = 'u32[144,128]{1,0:T(1,128)}', space=vmem, size = 0x12000, scoped, tag = 'internal scratch']
  %s0 = inlined_call_operand.vmem [shape: s32[64,1], index: 0, kind: input, shape index: {}]
  %s1 = inlined_call_operand.vmem [shape: f32[96,128], index: 1, kind: input, shape index: {}]
  %s2 = inlined_call_operand.vmem [shape: f32[8,256], index: 2, kind: output, shape index: {}]
  %s3 = sld [smem:[#allocation0]]
  $region18: #{rnn_encoder_forward.1} parent=0
    _
  %s5 = ssub.s32 1, %s3
  %s6 = scalar_select 0, %s5, %s3
  // Predicated region
  $region2: #{rnn_encoder_forward.1} parent=0 // pred_check
    _
  $region3: #{rnn_encoder_forward.1} parent=0 // pred_check_branch
    %8 = sbr.rel (0) target = $region5
  $region4: #{rnn_encoder_forward.1} parent=0 // pred_region
    _
  $region5: #{rnn_encoder_forward.1} parent=0 // pred_fallthru
    _
  // Predicated region
  $region6: #{rnn_encoder_forward.1} parent=0 // pred_check
    _
  $region7: #{rnn_encoder_forward.1} parent=0 // pred_check_branch
    %10 = sbr.rel (0) target = $region9
  $region8: #{rnn_encoder_forward.1} parent=0 // pred_region
    _
  $region9: #{rnn_encoder_forward.1} parent=0 // pred_fallthru
    _
  %v11 = vld [vmem:[%s1] sm:$0xff]
  %v12 = vld [vmem:[%s1 + $0x8] sm:$0xff]
  %v13 = vld [vmem:[%s1 + $0x10] sm:$0xff]
  %v14 = vld [vmem:[%s1 + $0x18] sm:$0xff]
  %v15 = vld [vmem:[%s1 + $0x20] sm:$0xff]
  %v16 = vld [vmem:[%s1 + $0x28] sm:$0xff]
  %v17 = vld [vmem:[%s1 + $0x30] sm:$0xff]
  %v18 = vld [vmem:[%s1 + $0x38] sm:$0xff]
  %v19 = vld [vmem:[%s1 + $0x40] sm:$0xff]
  %v20 = vld [vmem:[%s1 + $0x48] sm:$0xff]
  %v21 = vld [vmem:[%s1 + $0x50] sm:$0xff]
  %v22 = vld [vmem:[%s1 + $0x58] sm:$0xff]
  %v23 = vld [vmem:[%s0] sm:$0xff]
  %v24 = vld [vmem:[%s0 + $0x8] sm:$0xff]
  %v25 = vld [vmem:[%s0 + $0x10] sm:$0xff]
  %v26 = vld [vmem:[%s0 + $0x18] sm:$0xff]
  %v27 = vld [vmem:[%s0 + $0x20] sm:$0xff]
  %v28 = vld [vmem:[%s0 + $0x28] sm:$0xff]
  %v29 = vld [vmem:[%s0 + $0x30] sm:$0xff]
  %v30 = vld [vmem:[%s0 + $0x38] sm:$0xff]
  %v31 = vlaneseq
  %v32 = vand.u32 %v31, 127
  %33 = vset.pattern.permute.xlu0 0
  %34 = vperm.xlu0 %33, %v23
  %v35 = vpop.permute.xlu0 %34
  %36 = vset.pattern.permute.xlu0 0
  %37 = vperm.xlu0 %36, %v24
  %v38 = vpop.permute.xlu0 %37
  %39 = vset.pattern.permute.xlu0 0
  %40 = vperm.xlu0 %39, %v25
  %v41 = vpop.permute.xlu0 %40
  %42 = vset.pattern.permute.xlu0 0
  %43 = vperm.xlu0 %42, %v26
  %v44 = vpop.permute.xlu0 %43
  %45 = vset.pattern.permute.xlu0 0
  %46 = vperm.xlu0 %45, %v27
  %v47 = vpop.permute.xlu0 %46
  %48 = vset.pattern.permute.xlu0 0
  %49 = vperm.xlu0 %48, %v28
  %v50 = vpop.permute.xlu0 %49
  %51 = vset.pattern.permute.xlu0 0
  %52 = vperm.xlu0 %51, %v29
  %v53 = vpop.permute.xlu0 %52
  %54 = vset.pattern.permute.xlu0 0
  %55 = vperm.xlu0 %54, %v30
  %v56 = vpop.permute.xlu0 %55
  %vm57 = vcmp.eq.s32.totalorder %v35, %v32
  %vm58 = vcmp.eq.s32.totalorder %v38, %v32
  %vm59 = vcmp.eq.s32.totalorder %v41, %v32
  %vm60 = vcmp.eq.s32.totalorder %v44, %v32
  %vm61 = vcmp.eq.s32.totalorder %v47, %v32
  %vm62 = vcmp.eq.s32.totalorder %v50, %v32
  %vm63 = vcmp.eq.s32.totalorder %v53, %v32
  %vm64 = vcmp.eq.s32.totalorder %v56, %v32
  %v65 = vsel %vm57, 1, 0
  %v66 = vsel %vm58, 1, 0
  %v67 = vsel %vm59, 1, 0
  %v68 = vsel %vm60, 1, 0
  %v69 = vsel %vm61, 1, 0
  %v70 = vsel %vm62, 1, 0
  %v71 = vsel %vm63, 1, 0
  %v72 = vsel %vm64, 1, 0
  %v73 = vcvt.s32.f32 %v65
  %v74 = vcvt.s32.f32 %v66
  %v75 = vcvt.s32.f32 %v67
  %v76 = vcvt.s32.f32 %v68
  %v77 = vcvt.s32.f32 %v69
  %v78 = vcvt.s32.f32 %v70
  %v79 = vcvt.s32.f32 %v71
  %v80 = vcvt.s32.f32 %v72
  %vm81 = vcmask 785408
  %v83 = vsel %vm81, %v73, 0
  %v86 = vsel %vm81, %v74, 0
  %v89 = vsel %vm81, %v75, 0
  %v92 = vsel %vm81, %v76, 0
  %v95 = vsel %vm81, %v77, 0
  %v98 = vsel %vm81, %v78, 0
  %v101 = vsel %vm81, %v79, 0
  %v104 = vsel %vm81, %v80, 0
  %106 = vmatprep.subr.mxu0 0.0
  %107 = vmatpush1.msra.mxu0 %v11
  %108 = vmatprep.subr.mxu0 0.0
  %109 = vmatpush1.msra.mxu0 %v12
  %110 = vmatprep.subr.mxu0 0.0
  %111 = vmatpush1.msra.mxu0 %v13
  %112 = vmatprep.subr.mxu0 0.0
  %113 = vmatpush1.msra.mxu0 %v14
  %114 = vmatprep.subr.mxu0 0.0
  %115 = vmatpush1.msra.mxu0 %v15
  %116 = vmatprep.subr.mxu0 0.0
  %117 = vmatpush1.msra.mxu0 %v16
  %118 = vmatprep.subr.mxu0 0.0
  %119 = vmatpush1.msra.mxu0 %v17
  %120 = vmatprep.subr.mxu0 0.0
  %121 = vmatpush1.msra.mxu0 %v18
  %122 = vmatprep.subr.mxu0 0.0
  %123 = vmatpush1.msra.mxu0 %v19
  %124 = vmatprep.subr.mxu0 0.0
  %125 = vmatpush1.msra.mxu0 %v20
  %126 = vmatprep.subr.mxu0 0.0
  %127 = vmatpush1.msra.mxu0 %v21
  %128 = vmatprep.subr.mxu0 0.0
  %129 = vmatpush1.msra.mxu0 %v22
  %130 = vmatprep.subr.mxu0 0.0
  %131 = vmatpush1.msra.mxu0 0.0
  %132 = vmatprep.subr.mxu0 0.0
  %133 = vmatpush1.msra.mxu0 0.0
  %134 = vmatprep.subr.mxu0 0.0
  %135 = vmatpush1.msra.mxu0 0.0
  %136 = vmatprep.subr.mxu0 0.0
  %137 = vmatpush1.msra.mxu0 0.0
  %138 = vmatprep.subr.mxu0 0.0
  %139 = vmatpush1.msra.mxu0 0.0
  %140 = vmatprep.subr.mxu0 0.0
  %141 = vmatpush1.msra.mxu0 0.0
  %142 = vmatprep.subr.mxu0 0.0
  %143 = vmatpush1.msra.mxu0 0.0
  %144 = vmatprep.subr.mxu0 0.0
  %145 = vmatpush1.msra.mxu0 0.0
  %146 = vmatprep.subr.mxu0 0.0
  %147 = vmatpush1.msra.mxu0 0.0
  %148 = vmatprep.subr.mxu0 0.0
  %149 = vmatpush1.msra.mxu0 0.0
  %150 = vmatprep.subr.mxu0 0.0
  %151 = vmatpush1.msra.mxu0 0.0
  %152 = vmatprep.subr.mxu0 0.0
  %153 = vmatpush1.msra.mxu0 0.0
  %154 = vmatprep.subr.mxu0 0.0
  %155 = vmatpush1.msra.mxu0 0.0
  %156 = vmatprep.subr.mxu0 0.0
  %157 = vmatpush1.msra.mxu0 0.0
  %158 = vmatprep.subr.mxu0 0.0
  %159 = vmatpush1.msra.mxu0 0.0
  %160 = vmatprep.subr.mxu0 0.0
  %161 = vmatpush1.msra.mxu0 0.0
  %162 = vmatprep.subr.mxu0 0.0
  %163 = vmatpush1.msra.mxu0 0.0
  %164 = vmatprep.subr.mxu0 0.0
  %165 = vmatpush1.msra.mxu0 0.0
  %166 = vmatprep.subr.mxu0 0.0
  %167 = vmatpush1.msra.mxu0 0.0
  %168 = vmatprep.subr.mxu0 0.0
  %169 = vmatpush1.msra.mxu0 0.0
  %170 = vmatprep.mubr.f32.mxu0 0.0
  %171 = vmatmul.mubr.f32.gmra.mrb[0].mxu0 %v83
  %v172 = vpop.f32.mrb[0].mxu0
  %v173 = vadd.f32 0.0, %v172
  %v174 = vpop.f32.mrb[0].mxu0
  %175 = vmatprep.mubr.f32.mxu0 0.0
  %176 = vmatmul.mubr.f32.gmra.mrb[0].mxu0 %v86
  %v177 = vpop.f32.mrb[0].mxu0
  %v178 = vadd.f32 0.0, %v177
  %v179 = vpop.f32.mrb[0].mxu0
  %180 = vmatprep.mubr.f32.mxu0 0.0
  %181 = vmatmul.mubr.f32.gmra.mrb[0].mxu0 %v89
  %v182 = vpop.f32.mrb[0].mxu0
  %v183 = vadd.f32 0.0, %v182
  %v184 = vpop.f32.mrb[0].mxu0
  %185 = vmatprep.mubr.f32.mxu0 0.0
  %186 = vmatmul.mubr.f32.gmra.mrb[0].mxu0 %v92
  %v187 = vpop.f32.mrb[0].mxu0
  %v188 = vadd.f32 0.0, %v187
  %v189 = vpop.f32.mrb[0].mxu0
  %190 = vmatprep.mubr.f32.mxu0 0.0
  %191 = vmatmul.mubr.f32.gmra.mrb[0].mxu0 %v95
  %v192 = vpop.f32.mrb[0].mxu0
  %v193 = vadd.f32 0.0, %v192
  %v194 = vpop.f32.mrb[0].mxu0
  %195 = vmatprep.mubr.f32.mxu0 0.0
  %196 = vmatmul.mubr.f32.gmra.mrb[0].mxu0 %v98
  %v197 = vpop.f32.mrb[0].mxu0
  %v198 = vadd.f32 0.0, %v197
  %v199 = vpop.f32.mrb[0].mxu0
  %200 = vmatprep.mubr.f32.mxu0 0.0
  %201 = vmatmul.mubr.f32.gmra.mrb[0].mxu0 %v101
  %v202 = vpop.f32.mrb[0].mxu0
  %v203 = vadd.f32 0.0, %v202
  %v204 = vpop.f32.mrb[0].mxu0
  %205 = vmatprep.mubr.f32.mxu0 0.0
  %206 = vmatmul.mubr.f32.gmra.mrb[0].mxu0 %v104
  %v207 = vpop.f32.mrb[0].mxu0
  %v208 = vadd.f32 0.0, %v207
  %v209 = vpop.f32.mrb[0].mxu0
  %210 = vdwg.mxu0
  %vm211 = vcmask 261120
  %v213 = vsel %vm211, 0.0, 0
  %215 = vmatprep.subr.mxu0 0.0
  %216 = vmatpush1.msra.mxu0 %v18
  %217 = vmatprep.subr.mxu0 0.0
  %218 = vmatpush1.msra.mxu0 %v19
  %219 = vmatprep.subr.mxu0 0.0
  %220 = vmatpush1.msra.mxu0 %v20
  %221 = vmatprep.subr.mxu0 0.0
  %222 = vmatpush1.msra.mxu0 %v21
  %223 = vmatprep.subr.mxu0 0.0
  %224 = vmatpush1.msra.mxu0 0.0
  %225 = vmatprep.subr.mxu0 0.0
  %226 = vmatpush1.msra.mxu0 0.0
  %227 = vmatprep.subr.mxu0 0.0
  %228 = vmatpush1.msra.mxu0 0.0
  %229 = vmatprep.subr.mxu0 0.0
  %230 = vmatpush1.msra.mxu0 0.0
  %231 = vmatprep.subr.mxu0 0.0
  %232 = vmatpush1.msra.mxu0 0.0
  %233 = vmatprep.subr.mxu0 0.0
  %234 = vmatpush1.msra.mxu0 0.0
  %235 = vmatprep.subr.mxu0 0.0
  %236 = vmatpush1.msra.mxu0 0.0
  %237 = vmatprep.subr.mxu0 0.0
  %238 = vmatpush1.msra.mxu0 0.0
  %239 = vmatprep.subr.mxu0 0.0
  %240 = vmatpush1.msra.mxu0 0.0
  %241 = vmatprep.subr.mxu0 0.0
  %242 = vmatpush1.msra.mxu0 0.0
  %243 = vmatprep.subr.mxu0 0.0
  %244 = vmatpush1.msra.mxu0 0.0
  %245 = vmatprep.subr.mxu0 0.0
  %246 = vmatpush1.msra.mxu0 0.0
  %247 = vmatprep.subr.mxu0 0.0
  %248 = vmatpush1.msra.mxu0 0.0
  %249 = vmatprep.subr.mxu0 0.0
  %250 = vmatpush1.msra.mxu0 0.0
  %251 = vmatprep.subr.mxu0 0.0
  %252 = vmatpush1.msra.mxu0 0.0
  %253 = vmatprep.subr.mxu0 0.0
  %254 = vmatpush1.msra.mxu0 0.0
  %255 = vmatprep.subr.mxu0 0.0
  %256 = vmatpush1.msra.mxu0 0.0
  %257 = vmatprep.subr.mxu0 0.0
  %258 = vmatpush1.msra.mxu0 0.0
  %259 = vmatprep.subr.mxu0 0.0
  %260 = vmatpush1.msra.mxu0 0.0
  %261 = vmatprep.subr.mxu0 0.0
  %262 = vmatpush1.msra.mxu0 0.0
  %263 = vmatprep.subr.mxu0 0.0
  %264 = vmatpush1.msra.mxu0 0.0
  %265 = vmatprep.subr.mxu0 0.0
  %266 = vmatpush1.msra.mxu0 0.0
  %267 = vmatprep.subr.mxu0 0.0
  %268 = vmatpush1.msra.mxu0 0.0
  %269 = vmatprep.subr.mxu0 0.0
  %270 = vmatpush1.msra.mxu0 0.0
  %271 = vmatprep.subr.mxu0 0.0
  %272 = vmatpush1.msra.mxu0 0.0
  %273 = vmatprep.subr.mxu0 0.0
  %274 = vmatpush1.msra.mxu0 0.0
  %275 = vmatprep.subr.mxu0 0.0
  %276 = vmatpush1.msra.mxu0 0.0
  %277 = vmatprep.subr.mxu0 0.0
  %278 = vmatpush1.msra.mxu0 0.0
  %279 = vmatprep.mubr.f32.mxu0 0.0
  %280 = vmatmul.mubr.f32.gmra.mrb[0].mxu0 %v213
  %v281 = vpop.f32.mrb[0].mxu0
  %v282 = vadd.f32 0.0, %v281
  %v283 = vpop.f32.mrb[0].mxu0
  %284 = vdwg.mxu0
  %v285 = vadd.f32 %v173, %v282
  %v286 = vxor.u32 %v285, 2147483648
  %v287 = vmul.f32 %v286, 1.442695
  %v288 = vpow.pop %v287
  %v289 = vadd.f32 %v288, 1.0
  %v290 = vrcp.pop %v289
  %v291 = vmul.f32 1.0, %v290
  %v292 = vlaneseq
  %v293 = vshrl.u32 %v292, 7
  %v294 = vsub.s32 0, %v293
  %v295 = vrot.slane %v22, %v294
  %297 = vrot.lane.b32.xlu0 %v295, 64
  %v298 = vpop.permute.xlu0 %297
  %v300 = vadd.f32 %v282, %v298
  %302 = vrot.lane.b32.xlu0 %v300, 64
  %v303 = vpop.permute.xlu0 %302
  %v305 = vmul.f32 %v291, %v303
  %307 = vrot.lane.b32.xlu0 %v305, 64
  %v308 = vpop.permute.xlu0 %307
  %v310 = vadd.f32 %v173, %v308
  %v311 = vtanh.pop %v310
  %v312 = vsub.f32 0.0, %v311
  %314 = vrot.lane.b32.xlu0 %v312, 96
  %v315 = vpop.permute.xlu0 %314
  %v317 = vmul.f32 %v291, %v315
  %319 = vrot.lane.b32.xlu0 %v317, 32
  %v320 = vpop.permute.xlu0 %319
  %v322 = vadd.f32 %v311, %v320
  %324 = vrot.lane.b32.xlu0 %v322, 64
  %v325 = vpop.permute.xlu0 %324
  %v326 = vsel %vm211, %v325, 0
  %328 = vmatprep.subr.mxu0 0.0
  %329 = vmatpush1.msra.mxu0 %v18
  %330 = vmatprep.subr.mxu0 0.0
  %331 = vmatpush1.msra.mxu0 %v19
  %332 = vmatprep.subr.mxu0 0.0
  %333 = vmatpush1.msra.mxu0 %v20
  %334 = vmatprep.subr.mxu0 0.0
  %335 = vmatpush1.msra.mxu0 %v21
  %336 = vmatprep.subr.mxu0 0.0
  %337 = vmatpush1.msra.mxu0 0.0
  %338 = vmatprep.subr.mxu0 0.0
  %339 = vmatpush1.msra.mxu0 0.0
  %340 = vmatprep.subr.mxu0 0.0
  %341 = vmatpush1.msra.mxu0 0.0
  %342 = vmatprep.subr.mxu0 0.0
  %343 = vmatpush1.msra.mxu0 0.0
  %344 = vmatprep.subr.mxu0 0.0
  %345 = vmatpush1.msra.mxu0 0.0
  %346 = vmatprep.subr.mxu0 0.0
  %347 = vmatpush1.msra.mxu0 0.0
  %348 = vmatprep.subr.mxu0 0.0
  %349 = vmatpush1.msra.mxu0 0.0
  %350 = vmatprep.subr.mxu0 0.0
  %351 = vmatpush1.msra.mxu0 0.0
  %352 = vmatprep.subr.mxu0 0.0
  %353 = vmatpush1.msra.mxu0 0.0
  %354 = vmatprep.subr.mxu0 0.0
  %355 = vmatpush1.msra.mxu0 0.0
  %356 = vmatprep.subr.mxu0 0.0
  %357 = vmatpush1.msra.mxu0 0.0
  %358 = vmatprep.subr.mxu0 0.0
  %359 = vmatpush1.msra.mxu0 0.0
  %360 = vmatprep.subr.mxu0 0.0
  %361 = vmatpush1.msra.mxu0 0.0
  %362 = vmatprep.subr.mxu0 0.0
  %363 = vmatpush1.msra.mxu0 0.0
  %364 = vmatprep.subr.mxu0 0.0
  %365 = vmatpush1.msra.mxu0 0.0
  %366 = vmatprep.subr.mxu0 0.0
  %367 = vmatpush1.msra.mxu0 0.0
  %368 = vmatprep.subr.mxu0 0.0
  %369 = vmatpush1.msra.mxu0 0.0
  %370 = vmatprep.subr.mxu0 0.0
  %371 = vmatpush1.msra.mxu0 0.0
  %372 = vmatprep.subr.mxu0 0.0
  %373 = vmatpush1.msra.mxu0 0.0
  %374 = vmatprep.subr.mxu0 0.0
  %375 = vmatpush1.msra.mxu0 0.0
  %376 = vmatprep.subr.mxu0 0.0
  %377 = vmatpush1.msra.mxu0 0.0
  %378 = vmatprep.subr.mxu0 0.0
  %379 = vmatpush1.msra.mxu0 0.0
  %380 = vmatprep.subr.mxu0 0.0
  %381 = vmatpush1.msra.mxu0 0.0
  %382 = vmatprep.subr.mxu0 0.0
  %383 = vmatpush1.msra.mxu0 0.0
  %384 = vmatprep.subr.mxu0 0.0
  %385 = vmatpush1.msra.mxu0 0.0
  %386 = vmatprep.subr.mxu0 0.0
  %387 = vmatpush1.msra.mxu0 0.0
  %388 = vmatprep.subr.mxu0 0.0
  %389 = vmatpush1.msra.mxu0 0.0
  %390 = vmatprep.subr.mxu0 0.0
  %391 = vmatpush1.msra.mxu0 0.0
  %392 = vmatprep.mubr.f32.mxu0 0.0
  %393 = vmatmul.mubr.f32.gmra.mrb[0].mxu0 %v326
  %v394 = vpop.f32.mrb[0].mxu0
  %v395 = vadd.f32 0.0, %v394
  %v396 = vpop.f32.mrb[0].mxu0
  %397 = vdwg.mxu0
  %v398 = vadd.f32 %v178, %v395
  %v399 = vxor.u32 %v398, 2147483648
  %v400 = vmul.f32 %v399, 1.442695
  %v401 = vpow.pop %v400
  %v402 = vadd.f32 %v401, 1.0
  %v403 = vrcp.pop %v402
  %v404 = vmul.f32 1.0, %v403
  %v405 = vadd.f32 %v395, %v298
  %407 = vrot.lane.b32.xlu0 %v405, 64
  %v408 = vpop.permute.xlu0 %407
  %v410 = vmul.f32 %v404, %v408
  %412 = vrot.lane.b32.xlu0 %v410, 64
  %v413 = vpop.permute.xlu0 %412
  %v415 = vadd.f32 %v178, %v413
  %v416 = vtanh.pop %v415
  %v417 = vsub.f32 %v322, %v416
  %419 = vrot.lane.b32.xlu0 %v417, 96
  %v420 = vpop.permute.xlu0 %419
  %v422 = vmul.f32 %v404, %v420
  %424 = vrot.lane.b32.xlu0 %v422, 32
  %v425 = vpop.permute.xlu0 %424
  %v427 = vadd.f32 %v416, %v425
  %429 = vrot.lane.b32.xlu0 %v427, 64
  %v430 = vpop.permute.xlu0 %429
  %v431 = vsel %vm211, %v430, 0
  %433 = vmatprep.subr.mxu0 0.0
  %434 = vmatpush1.msra.mxu0 %v18
  %435 = vmatprep.subr.mxu0 0.0
  %436 = vmatpush1.msra.mxu0 %v19
  %437 = vmatprep.subr.mxu0 0.0
  %438 = vmatpush1.msra.mxu0 %v20
  %439 = vmatprep.subr.mxu0 0.0
  %440 = vmatpush1.msra.mxu0 %v21
  %441 = vmatprep.subr.mxu0 0.0
  %442 = vmatpush1.msra.mxu0 0.0
  %443 = vmatprep.subr.mxu0 0.0
  %444 = vmatpush1.msra.mxu0 0.0
  %445 = vmatprep.subr.mxu0 0.0
  %446 = vmatpush1.msra.mxu0 0.0
  %447 = vmatprep.subr.mxu0 0.0
  %448 = vmatpush1.msra.mxu0 0.0
  %449 = vmatprep.subr.mxu0 0.0
  %450 = vmatpush1.msra.mxu0 0.0
  %451 = vmatprep.subr.mxu0 0.0
  %452 = vmatpush1.msra.mxu0 0.0
  %453 = vmatprep.subr.mxu0 0.0
  %454 = vmatpush1.msra.mxu0 0.0
  %455 = vmatprep.subr.mxu0 0.0
  %456 = vmatpush1.msra.mxu0 0.0
  %457 = vmatprep.subr.mxu0 0.0
  %458 = vmatpush1.msra.mxu0 0.0
  %459 = vmatprep.subr.mxu0 0.0
  %460 = vmatpush1.msra.mxu0 0.0
  %461 = vmatprep.subr.mxu0 0.0
  %462 = vmatpush1.msra.mxu0 0.0
  %463 = vmatprep.subr.mxu0 0.0
  %464 = vmatpush1.msra.mxu0 0.0
  %465 = vmatprep.subr.mxu0 0.0
  %466 = vmatpush1.msra.mxu0 0.0
  %467 = vmatprep.subr.mxu0 0.0
  %468 = vmatpush1.msra.mxu0 0.0
  %469 = vmatprep.subr.mxu0 0.0
  %470 = vmatpush1.msra.mxu0 0.0
  %471 = vmatprep.subr.mxu0 0.0
  %472 = vmatpush1.msra.mxu0 0.0
  %473 = vmatprep.subr.mxu0 0.0
  %474 = vmatpush1.msra.mxu0 0.0
  %475 = vmatprep.subr.mxu0 0.0
  %476 = vmatpush1.msra.mxu0 0.0
  %477 = vmatprep.subr.mxu0 0.0
  %478 = vmatpush1.msra.mxu0 0.0
  %479 = vmatprep.subr.mxu0 0.0
  %480 = vmatpush1.msra.mxu0 0.0
  %481 = vmatprep.subr.mxu0 0.0
  %482 = vmatpush1.msra.mxu0 0.0
  %483 = vmatprep.subr.mxu0 0.0
  %484 = vmatpush1.msra.mxu0 0.0
  %485 = vmatprep.subr.mxu0 0.0
  %486 = vmatpush1.msra.mxu0 0.0
  %487 = vmatprep.subr.mxu0 0.0
  %488 = vmatpush1.msra.mxu0 0.0
  %489 = vmatprep.subr.mxu0 0.0
  %490 = vmatpush1.msra.mxu0 0.0
  %491 = vmatprep.subr.mxu0 0.0
  %492 = vmatpush1.msra.mxu0 0.0
  %493 = vmatprep.subr.mxu0 0.0
  %494 = vmatpush1.msra.mxu0 0.0
  %495 = vmatprep.subr.mxu0 0.0
  %496 = vmatpush1.msra.mxu0 0.0
  %497 = vmatprep.mubr.f32.mxu0 0.0
  %498 = vmatmul.mubr.f32.gmra.mrb[0].mxu0 %v431
  %v499 = vpop.f32.mrb[0].mxu0
  %v500 = vadd.f32 0.0, %v499
  %v501 = vpop.f32.mrb[0].mxu0
  %502 = vdwg.mxu0
  %v503 = vadd.f32 %v183, %v500
  %v504 = vxor.u32 %v503, 2147483648
  %v505 = vmul.f32 %v504, 1.442695
  %v506 = vpow.pop %v505
  %v507 = vadd.f32 %v506, 1.0
  %v508 = vrcp.pop %v507
  %v509 = vmul.f32 1.0, %v508
  %v510 = vadd.f32 %v500, %v298
  %512 = vrot.lane.b32.xlu0 %v510, 64
  %v513 = vpop.permute.xlu0 %512
  %v515 = vmul.f32 %v509, %v513
  %517 = vrot.lane.b32.xlu0 %v515, 64
  %v518 = vpop.permute.xlu0 %517
  %v520 = vadd.f32 %v183, %v518
  %v521 = vtanh.pop %v520
  %v522 = vsub.f32 %v427, %v521
  %524 = vrot.lane.b32.xlu0 %v522, 96
  %v525 = vpop.permute.xlu0 %524
  %v527 = vmul.f32 %v509, %v525
  %529 = vrot.lane.b32.xlu0 %v527, 32
  %v530 = vpop.permute.xlu0 %529
  %v532 = vadd.f32 %v521, %v530
  %534 = vrot.lane.b32.xlu0 %v532, 64
  %v535 = vpop.permute.xlu0 %534
  %v536 = vsel %vm211, %v535, 0
  %538 = vmatprep.subr.mxu0 0.0
  %539 = vmatpush1.msra.mxu0 %v18
  %540 = vmatprep.subr.mxu0 0.0
  %541 = vmatpush1.msra.mxu0 %v19
  %542 = vmatprep.subr.mxu0 0.0
  %543 = vmatpush1.msra.mxu0 %v20
  %544 = vmatprep.subr.mxu0 0.0
  %545 = vmatpush1.msra.mxu0 %v21
  %546 = vmatprep.subr.mxu0 0.0
  %547 = vmatpush1.msra.mxu0 0.0
  %548 = vmatprep.subr.mxu0 0.0
  %549 = vmatpush1.msra.mxu0 0.0
  %550 = vmatprep.subr.mxu0 0.0
  %551 = vmatpush1.msra.mxu0 0.0
  %552 = vmatprep.subr.mxu0 0.0
  %553 = vmatpush1.msra.mxu0 0.0
  %554 = vmatprep.subr.mxu0 0.0
  %555 = vmatpush1.msra.mxu0 0.0
  %556 = vmatprep.subr.mxu0 0.0
  %557 = vmatpush1.msra.mxu0 0.0
  %558 = vmatprep.subr.mxu0 0.0
  %559 = vmatpush1.msra.mxu0 0.0
  %560 = vmatprep.subr.mxu0 0.0
  %561 = vmatpush1.msra.mxu0 0.0
  %562 = vmatprep.subr.mxu0 0.0
  %563 = vmatpush1.msra.mxu0 0.0
  %564 = vmatprep.subr.mxu0 0.0
  %565 = vmatpush1.msra.mxu0 0.0
  %566 = vmatprep.subr.mxu0 0.0
  %567 = vmatpush1.msra.mxu0 0.0
  %568 = vmatprep.subr.mxu0 0.0
  %569 = vmatpush1.msra.mxu0 0.0
  %570 = vmatprep.subr.mxu0 0.0
  %571 = vmatpush1.msra.mxu0 0.0
  %572 = vmatprep.subr.mxu0 0.0
  %573 = vmatpush1.msra.mxu0 0.0
  %574 = vmatprep.subr.mxu0 0.0
  %575 = vmatpush1.msra.mxu0 0.0
  %576 = vmatprep.subr.mxu0 0.0
  %577 = vmatpush1.msra.mxu0 0.0
  %578 = vmatprep.subr.mxu0 0.0
  %579 = vmatpush1.msra.mxu0 0.0
  %580 = vmatprep.subr.mxu0 0.0
  %581 = vmatpush1.msra.mxu0 0.0
  %582 = vmatprep.subr.mxu0 0.0
  %583 = vmatpush1.msra.mxu0 0.0
  %584 = vmatprep.subr.mxu0 0.0
  %585 = vmatpush1.msra.mxu0 0.0
  %586 = vmatprep.subr.mxu0 0.0
  %587 = vmatpush1.msra.mxu0 0.0
  %588 = vmatprep.subr.mxu0 0.0
  %589 = vmatpush1.msra.mxu0 0.0
  %590 = vmatprep.subr.mxu0 0.0
  %591 = vmatpush1.msra.mxu0 0.0
  %592 = vmatprep.subr.mxu0 0.0
  %593 = vmatpush1.msra.mxu0 0.0
  %594 = vmatprep.subr.mxu0 0.0
  %595 = vmatpush1.msra.mxu0 0.0
  %596 = vmatprep.subr.mxu0 0.0
  %597 = vmatpush1.msra.mxu0 0.0
  %598 = vmatprep.subr.mxu0 0.0
  %599 = vmatpush1.msra.mxu0 0.0
  %600 = vmatprep.subr.mxu0 0.0
  %601 = vmatpush1.msra.mxu0 0.0
  %602 = vmatprep.mubr.f32.mxu0 0.0
  %603 = vmatmul.mubr.f32.gmra.mrb[0].mxu0 %v536
  %v604 = vpop.f32.mrb[0].mxu0
  %v605 = vadd.f32 0.0, %v604
  %v606 = vpop.f32.mrb[0].mxu0
  %607 = vdwg.mxu0
  %v608 = vadd.f32 %v188, %v605
  %v609 = vxor.u32 %v608, 2147483648
  %v610 = vmul.f32 %v609, 1.442695
  %v611 = vpow.pop %v610
  %v612 = vadd.f32 %v611, 1.0
  %v613 = vrcp.pop %v612
  %v614 = vmul.f32 1.0, %v613
  %v615 = vadd.f32 %v605, %v298
  %617 = vrot.lane.b32.xlu0 %v615, 64
  %v618 = vpop.permute.xlu0 %617
  %v620 = vmul.f32 %v614, %v618
  %622 = vrot.lane.b32.xlu0 %v620, 64
  %v623 = vpop.permute.xlu0 %622
  %v625 = vadd.f32 %v188, %v623
  %v626 = vtanh.pop %v625
  %v627 = vsub.f32 %v532, %v626
  %629 = vrot.lane.b32.xlu0 %v627, 96
  %v630 = vpop.permute.xlu0 %629
  %v632 = vmul.f32 %v614, %v630
  %634 = vrot.lane.b32.xlu0 %v632, 32
  %v635 = vpop.permute.xlu0 %634
  %v637 = vadd.f32 %v626, %v635
  %639 = vrot.lane.b32.xlu0 %v637, 64
  %v640 = vpop.permute.xlu0 %639
  %v641 = vsel %vm211, %v640, 0
  %643 = vmatprep.subr.mxu0 0.0
  %644 = vmatpush1.msra.mxu0 %v18
  %645 = vmatprep.subr.mxu0 0.0
  %646 = vmatpush1.msra.mxu0 %v19
  %647 = vmatprep.subr.mxu0 0.0
  %648 = vmatpush1.msra.mxu0 %v20
  %649 = vmatprep.subr.mxu0 0.0
  %650 = vmatpush1.msra.mxu0 %v21
  %651 = vmatprep.subr.mxu0 0.0
  %652 = vmatpush1.msra.mxu0 0.0
  %653 = vmatprep.subr.mxu0 0.0
  %654 = vmatpush1.msra.mxu0 0.0
  %655 = vmatprep.subr.mxu0 0.0
  %656 = vmatpush1.msra.mxu0 0.0
  %657 = vmatprep.subr.mxu0 0.0
  %658 = vmatpush1.msra.mxu0 0.0
  %659 = vmatprep.subr.mxu0 0.0
  %660 = vmatpush1.msra.mxu0 0.0
  %661 = vmatprep.subr.mxu0 0.0
  %662 = vmatpush1.msra.mxu0 0.0
  %663 = vmatprep.subr.mxu0 0.0
  %664 = vmatpush1.msra.mxu0 0.0
  %665 = vmatprep.subr.mxu0 0.0
  %666 = vmatpush1.msra.mxu0 0.0
  %667 = vmatprep.subr.mxu0 0.0
  %668 = vmatpush1.msra.mxu0 0.0
  %669 = vmatprep.subr.mxu0 0.0
  %670 = vmatpush1.msra.mxu0 0.0
  %671 = vmatprep.subr.mxu0 0.0
  %672 = vmatpush1.msra.mxu0 0.0
  %673 = vmatprep.subr.mxu0 0.0
  %674 = vmatpush1.msra.mxu0 0.0
  %675 = vmatprep.subr.mxu0 0.0
  %676 = vmatpush1.msra.mxu0 0.0
  %677 = vmatprep.subr.mxu0 0.0
  %678 = vmatpush1.msra.mxu0 0.0
  %679 = vmatprep.subr.mxu0 0.0
  %680 = vmatpush1.msra.mxu0 0.0
  %681 = vmatprep.subr.mxu0 0.0
  %682 = vmatpush1.msra.mxu0 0.0
  %683 = vmatprep.subr.mxu0 0.0
  %684 = vmatpush1.msra.mxu0 0.0
  %685 = vmatprep.subr.mxu0 0.0
  %686 = vmatpush1.msra.mxu0 0.0
  %687 = vmatprep.subr.mxu0 0.0
  %688 = vmatpush1.msra.mxu0 0.0
  %689 = vmatprep.subr.mxu0 0.0
  %690 = vmatpush1.msra.mxu0 0.0
  %691 = vmatprep.subr.mxu0 0.0
  %692 = vmatpush1.msra.mxu0 0.0
  %693 = vmatprep.subr.mxu0 0.0
  %694 = vmatpush1.msra.mxu0 0.0
  %695 = vmatprep.subr.mxu0 0.0
  %696 = vmatpush1.msra.mxu0 0.0
  %697 = vmatprep.subr.mxu0 0.0
  %698 = vmatpush1.msra.mxu0 0.0
  %699 = vmatprep.subr.mxu0 0.0
  %700 = vmatpush1.msra.mxu0 0.0
  %701 = vmatprep.subr.mxu0 0.0
  %702 = vmatpush1.msra.mxu0 0.0
  %703 = vmatprep.subr.mxu0 0.0
  %704 = vmatpush1.msra.mxu0 0.0
  %705 = vmatprep.subr.mxu0 0.0
  %706 = vmatpush1.msra.mxu0 0.0
  %707 = vmatprep.mubr.f32.mxu0 0.0
  %708 = vmatmul.mubr.f32.gmra.mrb[0].mxu0 %v641
  %v709 = vpop.f32.mrb[0].mxu0
  %v710 = vadd.f32 0.0, %v709
  %v711 = vpop.f32.mrb[0].mxu0
  %712 = vdwg.mxu0
  %v713 = vadd.f32 %v193, %v710
  %v714 = vxor.u32 %v713, 2147483648
  %v715 = vmul.f32 %v714, 1.442695
  %v716 = vpow.pop %v715
  %v717 = vadd.f32 %v716, 1.0
  %v718 = vrcp.pop %v717
  %v719 = vmul.f32 1.0, %v718
  %v720 = vadd.f32 %v710, %v298
  %722 = vrot.lane.b32.xlu0 %v720, 64
  %v723 = vpop.permute.xlu0 %722
  %v725 = vmul.f32 %v719, %v723
  %727 = vrot.lane.b32.xlu0 %v725, 64
  %v728 = vpop.permute.xlu0 %727
  %v730 = vadd.f32 %v193, %v728
  %v731 = vtanh.pop %v730
  %v732 = vsub.f32 %v637, %v731
  %734 = vrot.lane.b32.xlu0 %v732, 96
  %v735 = vpop.permute.xlu0 %734
  %v737 = vmul.f32 %v719, %v735
  %739 = vrot.lane.b32.xlu0 %v737, 32
  %v740 = vpop.permute.xlu0 %739
  %v742 = vadd.f32 %v731, %v740
  %744 = vrot.lane.b32.xlu0 %v742, 64
  %v745 = vpop.permute.xlu0 %744
  %v746 = vsel %vm211, %v745, 0
  %748 = vmatprep.subr.mxu0 0.0
  %749 = vmatpush1.msra.mxu0 %v18
  %750 = vmatprep.subr.mxu0 0.0
  %751 = vmatpush1.msra.mxu0 %v19
  %752 = vmatprep.subr.mxu0 0.0
  %753 = vmatpush1.msra.mxu0 %v20
  %754 = vmatprep.subr.mxu0 0.0
  %755 = vmatpush1.msra.mxu0 %v21
  %756 = vmatprep.subr.mxu0 0.0
  %757 = vmatpush1.msra.mxu0 0.0
  %758 = vmatprep.subr.mxu0 0.0
  %759 = vmatpush1.msra.mxu0 0.0
  %760 = vmatprep.subr.mxu0 0.0
  %761 = vmatpush1.msra.mxu0 0.0
  %762 = vmatprep.subr.mxu0 0.0
  %763 = vmatpush1.msra.mxu0 0.0
  %764 = vmatprep.subr.mxu0 0.0
  %765 = vmatpush1.msra.mxu0 0.0
  %766 = vmatprep.subr.mxu0 0.0
  %767 = vmatpush1.msra.mxu0 0.0
  %768 = vmatprep.subr.mxu0 0.0
  %769 = vmatpush1.msra.mxu0 0.0
  %770 = vmatprep.subr.mxu0 0.0
  %771 = vmatpush1.msra.mxu0 0.0
  %772 = vmatprep.subr.mxu0 0.0
  %773 = vmatpush1.msra.mxu0 0.0
  %774 = vmatprep.subr.mxu0 0.0
  %775 = vmatpush1.msra.mxu0 0.0
  %776 = vmatprep.subr.mxu0 0.0
  %777 = vmatpush1.msra.mxu0 0.0
  %778 = vmatprep.subr.mxu0 0.0
  %779 = vmatpush1.msra.mxu0 0.0
  %780 = vmatprep.subr.mxu0 0.0
  %781 = vmatpush1.msra.mxu0 0.0
  %782 = vmatprep.subr.mxu0 0.0
  %783 = vmatpush1.msra.mxu0 0.0
  %784 = vmatprep.subr.mxu0 0.0
  %785 = vmatpush1.msra.mxu0 0.0
  %786 = vmatprep.subr.mxu0 0.0
  %787 = vmatpush1.msra.mxu0 0.0
  %788 = vmatprep.subr.mxu0 0.0
  %789 = vmatpush1.msra.mxu0 0.0
  %790 = vmatprep.subr.mxu0 0.0
  %791 = vmatpush1.msra.mxu0 0.0
  %792 = vmatprep.subr.mxu0 0.0
  %793 = vmatpush1.msra.mxu0 0.0
  %794 = vmatprep.subr.mxu0 0.0
  %795 = vmatpush1.msra.mxu0 0.0
  %796 = vmatprep.subr.mxu0 0.0
  %797 = vmatpush1.msra.mxu0 0.0
  %798 = vmatprep.subr.mxu0 0.0
  %799 = vmatpush1.msra.mxu0 0.0
  %800 = vmatprep.subr.mxu0 0.0
  %801 = vmatpush1.msra.mxu0 0.0
  %802 = vmatprep.subr.mxu0 0.0
  %803 = vmatpush1.msra.mxu0 0.0
  %804 = vmatprep.subr.mxu0 0.0
  %805 = vmatpush1.msra.mxu0 0.0
  %806 = vmatprep.subr.mxu0 0.0
  %807 = vmatpush1.msra.mxu0 0.0
  %808 = vmatprep.subr.mxu0 0.0
  %809 = vmatpush1.msra.mxu0 0.0
  %810 = vmatprep.subr.mxu0 0.0
  %811 = vmatpush1.msra.mxu0 0.0
  %812 = vmatprep.mubr.f32.mxu0 0.0
  %813 = vmatmul.mubr.f32.gmra.mrb[0].mxu0 %v746
  %v814 = vpop.f32.mrb[0].mxu0
  %v815 = vadd.f32 0.0, %v814
  %v816 = vpop.f32.mrb[0].mxu0
  %817 = vdwg.mxu0
  %v818 = vadd.f32 %v198, %v815
  %v819 = vxor.u32 %v818, 2147483648
  %v820 = vmul.f32 %v819, 1.442695
  %v821 = vpow.pop %v820
  %v822 = vadd.f32 %v821, 1.0
  %v823 = vrcp.pop %v822
  %v824 = vmul.f32 1.0, %v823
  %v825 = vadd.f32 %v815, %v298
  %827 = vrot.lane.b32.xlu0 %v825, 64
  %v828 = vpop.permute.xlu0 %827
  %v830 = vmul.f32 %v824, %v828
  %832 = vrot.lane.b32.xlu0 %v830, 64
  %v833 = vpop.permute.xlu0 %832
  %v835 = vadd.f32 %v198, %v833
  %v836 = vtanh.pop %v835
  %v837 = vsub.f32 %v742, %v836
  %839 = vrot.lane.b32.xlu0 %v837, 96
  %v840 = vpop.permute.xlu0 %839
  %v842 = vmul.f32 %v824, %v840
  %844 = vrot.lane.b32.xlu0 %v842, 32
  %v845 = vpop.permute.xlu0 %844
  %v847 = vadd.f32 %v836, %v845
  %849 = vrot.lane.b32.xlu0 %v847, 64
  %v850 = vpop.permute.xlu0 %849
  %v851 = vsel %vm211, %v850, 0
  %853 = vmatprep.subr.mxu0 0.0
  %854 = vmatpush1.msra.mxu0 %v18
  %855 = vmatprep.subr.mxu0 0.0
  %856 = vmatpush1.msra.mxu0 %v19
  %857 = vmatprep.subr.mxu0 0.0
  %858 = vmatpush1.msra.mxu0 %v20
  %859 = vmatprep.subr.mxu0 0.0
  %860 = vmatpush1.msra.mxu0 %v21
  %861 = vmatprep.subr.mxu0 0.0
  %862 = vmatpush1.msra.mxu0 0.0
  %863 = vmatprep.subr.mxu0 0.0
  %864 = vmatpush1.msra.mxu0 0.0
  %865 = vmatprep.subr.mxu0 0.0
  %866 = vmatpush1.msra.mxu0 0.0
  %867 = vmatprep.subr.mxu0 0.0
  %868 = vmatpush1.msra.mxu0 0.0
  %869 = vmatprep.subr.mxu0 0.0
  %870 = vmatpush1.msra.mxu0 0.0
  %871 = vmatprep.subr.mxu0 0.0
  %872 = vmatpush1.msra.mxu0 0.0
  %873 = vmatprep.subr.mxu0 0.0
  %874 = vmatpush1.msra.mxu0 0.0
  %875 = vmatprep.subr.mxu0 0.0
  %876 = vmatpush1.msra.mxu0 0.0
  %877 = vmatprep.subr.mxu0 0.0
  %878 = vmatpush1.msra.mxu0 0.0
  %879 = vmatprep.subr.mxu0 0.0
  %880 = vmatpush1.msra.mxu0 0.0
  %881 = vmatprep.subr.mxu0 0.0
  %882 = vmatpush1.msra.mxu0 0.0
  %883 = vmatprep.subr.mxu0 0.0
  %884 = vmatpush1.msra.mxu0 0.0
  %885 = vmatprep.subr.mxu0 0.0
  %886 = vmatpush1.msra.mxu0 0.0
  %887 = vmatprep.subr.mxu0 0.0
  %888 = vmatpush1.msra.mxu0 0.0
  %889 = vmatprep.subr.mxu0 0.0
  %890 = vmatpush1.msra.mxu0 0.0
  %891 = vmatprep.subr.mxu0 0.0
  %892 = vmatpush1.msra.mxu0 0.0
  %893 = vmatprep.subr.mxu0 0.0
  %894 = vmatpush1.msra.mxu0 0.0
  %895 = vmatprep.subr.mxu0 0.0
  %896 = vmatpush1.msra.mxu0 0.0
  %897 = vmatprep.subr.mxu0 0.0
  %898 = vmatpush1.msra.mxu0 0.0
  %899 = vmatprep.subr.mxu0 0.0
  %900 = vmatpush1.msra.mxu0 0.0
  %901 = vmatprep.subr.mxu0 0.0
  %902 = vmatpush1.msra.mxu0 0.0
  %903 = vmatprep.subr.mxu0 0.0
  %904 = vmatpush1.msra.mxu0 0.0
  %905 = vmatprep.subr.mxu0 0.0
  %906 = vmatpush1.msra.mxu0 0.0
  %907 = vmatprep.subr.mxu0 0.0
  %908 = vmatpush1.msra.mxu0 0.0
  %909 = vmatprep.subr.mxu0 0.0
  %910 = vmatpush1.msra.mxu0 0.0
  %911 = vmatprep.subr.mxu0 0.0
  %912 = vmatpush1.msra.mxu0 0.0
  %913 = vmatprep.subr.mxu0 0.0
  %914 = vmatpush1.msra.mxu0 0.0
  %915 = vmatprep.subr.mxu0 0.0
  %916 = vmatpush1.msra.mxu0 0.0
  %917 = vmatprep.mubr.f32.mxu0 0.0
  %918 = vmatmul.mubr.f32.gmra.mrb[0].mxu0 %v851
  %v919 = vpop.f32.mrb[0].mxu0
  %v920 = vadd.f32 0.0, %v919
  %v921 = vpop.f32.mrb[0].mxu0
  %922 = vdwg.mxu0
  %v923 = vadd.f32 %v203, %v920
  %v924 = vxor.u32 %v923, 2147483648
  %v925 = vmul.f32 %v924, 1.442695
  %v926 = vpow.pop %v925
  %v927 = vadd.f32 %v926, 1.0
  %v928 = vrcp.pop %v927
  %v929 = vmul.f32 1.0, %v928
  %v930 = vadd.f32 %v920, %v298
  %932 = vrot.lane.b32.xlu0 %v930, 64
  %v933 = vpop.permute.xlu0 %932
  %v935 = vmul.f32 %v929, %v933
  %937 = vrot.lane.b32.xlu0 %v935, 64
  %v938 = vpop.permute.xlu0 %937
  %v940 = vadd.f32 %v203, %v938
  %v941 = vtanh.pop %v940
  %v942 = vsub.f32 %v847, %v941
  %944 = vrot.lane.b32.xlu0 %v942, 96
  %v945 = vpop.permute.xlu0 %944
  %v947 = vmul.f32 %v929, %v945
  %949 = vrot.lane.b32.xlu0 %v947, 32
  %v950 = vpop.permute.xlu0 %949
  %v952 = vadd.f32 %v941, %v950
  %954 = vrot.lane.b32.xlu0 %v952, 64
  %v955 = vpop.permute.xlu0 %954
  %v956 = vsel %vm211, %v955, 0
  %958 = vmatprep.subr.mxu0 0.0
  %959 = vmatpush1.msra.mxu0 %v18
  %960 = vmatprep.subr.mxu0 0.0
  %961 = vmatpush1.msra.mxu0 %v19
  %962 = vmatprep.subr.mxu0 0.0
  %963 = vmatpush1.msra.mxu0 %v20
  %964 = vmatprep.subr.mxu0 0.0
  %965 = vmatpush1.msra.mxu0 %v21
  %966 = vmatprep.subr.mxu0 0.0
  %967 = vmatpush1.msra.mxu0 0.0
  %968 = vmatprep.subr.mxu0 0.0
  %969 = vmatpush1.msra.mxu0 0.0
  %970 = vmatprep.subr.mxu0 0.0
  %971 = vmatpush1.msra.mxu0 0.0
  %972 = vmatprep.subr.mxu0 0.0
  %973 = vmatpush1.msra.mxu0 0.0
  %974 = vmatprep.subr.mxu0 0.0
  %975 = vmatpush1.msra.mxu0 0.0
  %976 = vmatprep.subr.mxu0 0.0
  %977 = vmatpush1.msra.mxu0 0.0
  %978 = vmatprep.subr.mxu0 0.0
  %979 = vmatpush1.msra.mxu0 0.0
  %980 = vmatprep.subr.mxu0 0.0
  %981 = vmatpush1.msra.mxu0 0.0
  %982 = vmatprep.subr.mxu0 0.0
  %983 = vmatpush1.msra.mxu0 0.0
  %984 = vmatprep.subr.mxu0 0.0
  %985 = vmatpush1.msra.mxu0 0.0
  %986 = vmatprep.subr.mxu0 0.0
  %987 = vmatpush1.msra.mxu0 0.0
  %988 = vmatprep.subr.mxu0 0.0
  %989 = vmatpush1.msra.mxu0 0.0
  %990 = vmatprep.subr.mxu0 0.0
  %991 = vmatpush1.msra.mxu0 0.0
  %992 = vmatprep.subr.mxu0 0.0
  %993 = vmatpush1.msra.mxu0 0.0
  %994 = vmatprep.subr.mxu0 0.0
  %995 = vmatpush1.msra.mxu0 0.0
  %996 = vmatprep.subr.mxu0 0.0
  %997 = vmatpush1.msra.mxu0 0.0
  %998 = vmatprep.subr.mxu0 0.0
  %999 = vmatpush1.msra.mxu0 0.0
  %1000 = vmatprep.subr.mxu0 0.0
  %1001 = vmatpush1.msra.mxu0 0.0
  %1002 = vmatprep.subr.mxu0 0.0
  %1003 = vmatpush1.msra.mxu0 0.0
  %1004 = vmatprep.subr.mxu0 0.0
  %1005 = vmatpush1.msra.mxu0 0.0
  %1006 = vmatprep.subr.mxu0 0.0
  %1007 = vmatpush1.msra.mxu0 0.0
  %1008 = vmatprep.subr.mxu0 0.0
  %1009 = vmatpush1.msra.mxu0 0.0
  %1010 = vmatprep.subr.mxu0 0.0
  %1011 = vmatpush1.msra.mxu0 0.0
  %1012 = vmatprep.subr.mxu0 0.0
  %1013 = vmatpush1.msra.mxu0 0.0
  %1014 = vmatprep.subr.mxu0 0.0
  %1015 = vmatpush1.msra.mxu0 0.0
  %1016 = vmatprep.subr.mxu0 0.0
  %1017 = vmatpush1.msra.mxu0 0.0
  %1018 = vmatprep.subr.mxu0 0.0
  %1019 = vmatpush1.msra.mxu0 0.0
  %1020 = vmatprep.subr.mxu0 0.0
  %1021 = vmatpush1.msra.mxu0 0.0
  %1022 = vmatprep.mubr.f32.mxu0 0.0
  %1023 = vmatmul.mubr.f32.gmra.mrb[0].mxu0 %v956
  %v1024 = vpop.f32.mrb[0].mxu0
  %v1025 = vadd.f32 0.0, %v1024
  %v1026 = vpop.f32.mrb[0].mxu0
  %1027 = vdwg.mxu0
  %v1028 = vadd.f32 %v208, %v1025
  %v1029 = vxor.u32 %v1028, 2147483648
  %v1030 = vmul.f32 %v1029, 1.442695
  %v1031 = vpow.pop %v1030
  %v1032 = vadd.f32 %v1031, 1.0
  %v1033 = vrcp.pop %v1032
  %v1034 = vmul.f32 1.0, %v1033
  %v1035 = vadd.f32 %v1025, %v298
  %1037 = vrot.lane.b32.xlu0 %v1035, 64
  %v1038 = vpop.permute.xlu0 %1037
  %v1040 = vmul.f32 %v1034, %v1038
  %1042 = vrot.lane.b32.xlu0 %v1040, 64
  %v1043 = vpop.permute.xlu0 %1042
  %v1045 = vadd.f32 %v208, %v1043
  %v1046 = vtanh.pop %v1045
  %v1047 = vsub.f32 %v952, %v1046
  %1049 = vrot.lane.b32.xlu0 %v1047, 96
  %v1050 = vpop.permute.xlu0 %1049
  %v1052 = vmul.f32 %v1034, %v1050
  %1054 = vrot.lane.b32.xlu0 %v1052, 32
  %v1055 = vpop.permute.xlu0 %1054
  %v1057 = vadd.f32 %v1046, %v1055
  %1059 = vrot.lane.b32.xlu0 %v427, 96
  %v1060 = vpop.permute.xlu0 %1059
  %1062 = vrot.lane.b32.xlu0 %v637, 32
  %v1063 = vpop.permute.xlu0 %1062
  %1066 = vrot.lane.b32.xlu0 %v847, 96
  %v1067 = vpop.permute.xlu0 %1066
  %1070 = vrot.lane.b32.xlu0 %v1057, 32
  %v1071 = vpop.permute.xlu0 %1070
  %v1073 = vsel %vm211, %v325, %v1060
  %vm1074 = vcmask 523264
  %v1075 = vsel %vm1074, %v1073, %v532
  %v1076 = vsel %vm81, %v1075, %v1063
  %v1077 = vsel %vm211, %v745, %v1067
  %v1078 = vsel %vm1074, %v1077, %v952
  %v1079 = vsel %vm81, %v1078, %v1071
  %1080 = vst [vmem:[%s2] sm:$0xff] %v1076
  %1081 = vst [vmem:[%s2 + $0x8] sm:$0xff] %v1079
  // Predicated region
  $region10: #{rnn_encoder_forward.1} parent=0 // pred_check
    _
  $region11: #{rnn_encoder_forward.1} parent=0 // pred_check_branch
    %1083 = sbr.rel (0) target = $region13
  $region12: #{rnn_encoder_forward.1} parent=0 // pred_region
    _
  $region13: #{rnn_encoder_forward.1} parent=0 // pred_fallthru
    _
  // Predicated region
  $region14: #{rnn_encoder_forward.1} parent=0 // pred_check
    _
  $region15: #{rnn_encoder_forward.1} parent=0 // pred_check_branch
    %1085 = sbr.rel (0) target = $region17
  $region16: #{rnn_encoder_forward.1} parent=0 // pred_region
    _
  $region17: #{rnn_encoder_forward.1} parent=0 // pred_fallthru
    _

</llo_original>
